<compile_context>
chip_gen: v7x
topology: tpu7x:2x2x1
jax: 0.10.0
libtpu: 0.0.40
codegen_flags: <defaults>
</compile_context>

<pallas_src>
import functools

import jax
import jax.numpy as jnp
import numpy as np
from jax.experimental import pallas as pl
from jax.experimental.pallas import tpu as pltpu

EPS = 1e-6


# ---------------------------------------------------------------------------
# Path 1: the whole spatial extent of a row fits in one VMEM tile.
# ---------------------------------------------------------------------------
def _adain_fused_kernel(x_ref, sb_ref, o_ref):
    # x_ref:  (TM, HW)  rows = (batch, channel) pairs, flattened spatial
    # sb_ref: (TM, 2)   packed per-row [scale, bias] (precomputed style Linears)
    # o_ref:  (TM, HW)
    x = x_ref[...]
    sb = sb_ref[...]
    scale = sb[:, 0:1]
    bias = sb[:, 1:2]

    hw = x.shape[-1]
    # One-pass statistics (sum / sum-of-squares) over the lane (spatial) axis.
    # Slight cancellation risk for inputs with very large means; fine for
    # typical activations and the 1e-4 tolerance used here.
    s1 = jnp.sum(x, axis=-1, keepdims=True)                      # (TM, 1)
    s2 = jnp.sum(x * x, axis=-1, keepdims=True)                  # (TM, 1)
    mean = s1 * (1.0 / hw)
    # Unbiased variance (torch .std() default, ddof=1).  H*W == 1 gives Inf,
    # mirroring torch's NaN-ish behaviour for a single spatial element.
    var = jnp.maximum(s2 - s1 * mean, 0.0) / (hw - 1)
    std = jnp.sqrt(var)

    # Per-row FMA epilogue: no full-tile (x - mean) temporary, single output
    # store stream (matches v5e's single vst slot).
    mult = scale * pl.reciprocal(std + EPS)                      # (TM, 1)
    shift = bias - mean * mult                                   # (TM, 1)
    o_ref[...] = x * mult + shift


# ---------------------------------------------------------------------------
# Path 2 (large HW): column-tiled stats kernel + elementwise apply kernel.
# ---------------------------------------------------------------------------
def _adain_stats_kernel(x_ref, sb_ref, mult_ref, shift_ref, s1_ref, s2_ref,
                        *, hw_total, thw):
    # Grid: (row tiles, HW tiles); HW axis is a reduction ("arbitrary", last).
    k = pl.program_id(1)

    @pl.when(k == 0)
    def _():
        s1_ref[...] = jnp.zeros_like(s1_ref)
        s2_ref[...] = jnp.zeros_like(s2_ref)

    x = x_ref[...]
    if hw_total % thw != 0:
        # Mask the ragged final column block so garbage never enters the sums.
        col = jax.lax.broadcasted_iota(jnp.int32, x.shape, 1) + k * thw
        x = jnp.where(col < hw_total, x, 0.0)

    s1_ref[...] += jnp.sum(x, axis=-1, keepdims=True)
    s2_ref[...] += jnp.sum(x * x, axis=-1, keepdims=True)

    @pl.when(k == pl.num_programs(1) - 1)
    def _():
        sb = sb_ref[...]
        scale = sb[:, 0:1]
        bias = sb[:, 1:2]
        s1 = s1_ref[...]
        s2 = s2_ref[...]
        mean = s1 * (1.0 / hw_total)
        var = jnp.maximum(s2 - s1 * mean, 0.0) / (hw_total - 1)
        std = jnp.sqrt(var)
        mult = scale * pl.reciprocal(std + EPS)
        mult_ref[...] = mult
        shift_ref[...] = bias - mean * mult


def _adain_apply_kernel(x_ref, mult_ref, shift_ref, o_ref):
    o_ref[...] = x_ref[...] * mult_ref[...] + shift_ref[...]


# ---------------------------------------------------------------------------
# Wrapper
# ---------------------------------------------------------------------------
def _vmem_budgets():
    """(elements per x tile, scoped VMEM limit) chosen per TPU generation."""
    try:
        kind = jax.devices()[0].device_kind.lower()
    except Exception:
        kind = ""
    if ("v5" in kind) or ("v6" in kind):
        # 128 MiB physical VMEM: ~16 MiB streaming tiles, generous scoped limit.
        return 4 * 1024 * 1024, 96 << 20
    # v7x (64 MiB physical VMEM) and unknown parts: stay conservative so
    # 2x(in) + 2x(out) tiles + side streams leave headroom for compiler scratch.
    return 2 * 1024 * 1024, 48 << 20


def adaptive_instance_norm(inputs, style, w_scale, b_scale, w_bias, b_bias,
                           max_tile_elems=None):
    """inputs: (N, C, H, W) float32, style: (N, A) float32."""
    N, C, H, W = inputs.shape
    HW = H * W
    rows = N * C

    elem_budget, vmem_limit = _vmem_budgets()
    if max_tile_elems is not None:          # test hook / manual override
        elem_budget = max_tile_elems

    # Hoist the tiny style Linear layers out of the kernel (O(N*C*A) work,
    # negligible vs the O(N*C*HW) streaming traffic).  Pack scale & bias into
    # a single (rows, 2) side input -> one small per-step DMA.
    scale = (style @ w_scale.T + b_scale.reshape(1, C)).reshape(rows, 1)
    bias = (style @ w_bias.T + b_bias.reshape(1, C)).reshape(rows, 1)
    sb = jnp.concatenate([scale, bias], axis=1)

    x = inputs.reshape(rows, HW)            # contiguous reshape, no HBM copy
    out_shape = jax.ShapeDtypeStruct((rows, HW), inputs.dtype)

    if HW <= elem_budget // 8:
        # ----- fused single-kernel path -------------------------------------
        tm_cap = max(8, min(512, (elem_budget // HW) // 8 * 8))
        rows8 = ((rows + 7) // 8) * 8
        tm = min(tm_cap, rows8)
        # Give megacore (v7x: 2 TensorCores) at least 2 programs when possible.
        if pl.cdiv(rows, tm) < 2 and tm > 8:
            tm = max(8, ((pl.cdiv(rows, 2) + 7) // 8) * 8)
        grid = (pl.cdiv(rows, tm),)         # ragged final row block, no jnp.pad

        out = pl.pallas_call(
            _adain_fused_kernel,
            out_shape=out_shape,
            grid_spec=pltpu.PrefetchScalarGridSpec(
                num_scalar_prefetch=0,
                grid=grid,
                in_specs=[
                    pl.BlockSpec((tm, HW), lambda i: (i, 0)),   # x rows
                    pl.BlockSpec((tm, 2), lambda i: (i, 0)),    # packed scale/bias
                ],
                out_specs=pl.BlockSpec((tm, HW), lambda i: (i, 0)),
            ),
            compiler_params=pltpu.CompilerParams(
                dimension_semantics=("parallel",),
                vmem_limit_bytes=vmem_limit,
            ),
        )(x, sb)
    else:
        # ----- large-HW path: stats kernel then apply kernel ----------------
        tm = 8
        thw = max(128, ((elem_budget // tm) // 128) * 128)
        thw = min(thw, ((HW + 127) // 128) * 128)
        n_i = pl.cdiv(rows, tm)
        n_k = pl.cdiv(HW, thw)

        stats_kernel = functools.partial(_adain_stats_kernel,
                                         hw_total=HW, thw=thw)
        mult, shift = pl.pallas_call(
            stats_kernel,
            out_shape=(jax.ShapeDtypeStruct((rows, 1), jnp.float32),
                       jax.ShapeDtypeStruct((rows, 1), jnp.float32)),
            grid_spec=pltpu.PrefetchScalarGridSpec(
                num_scalar_prefetch=0,
                grid=(n_i, n_k),
                in_specs=[
                    pl.BlockSpec((tm, thw), lambda i, k: (i, k)),
                    pl.BlockSpec((tm, 2), lambda i, k: (i, 0)),
                ],
                out_specs=[
                    pl.BlockSpec((tm, 1), lambda i, k: (i, 0)),
                    pl.BlockSpec((tm, 1), lambda i, k: (i, 0)),
                ],
                scratch_shapes=[pltpu.VMEM((tm, 1), jnp.float32),
                                pltpu.VMEM((tm, 1), jnp.float32)],
            ),
            compiler_params=pltpu.CompilerParams(
                dimension_semantics=("parallel", "arbitrary"),
                vmem_limit_bytes=vmem_limit,
            ),
        )(x, sb)

        out = pl.pallas_call(
            _adain_apply_kernel,
            out_shape=out_shape,
            grid_spec=pltpu.PrefetchScalarGridSpec(
                num_scalar_prefetch=0,
                grid=(n_i, n_k),
                in_specs=[
                    pl.BlockSpec((tm, thw), lambda i, k: (i, k)),
                    pl.BlockSpec((tm, 1), lambda i, k: (i, 0)),
                    pl.BlockSpec((tm, 1), lambda i, k: (i, 0)),
                ],
                out_specs=pl.BlockSpec((tm, thw), lambda i, k: (i, k)),
            ),
            compiler_params=pltpu.CompilerParams(
                dimension_semantics=("parallel", "parallel"),
                vmem_limit_bytes=vmem_limit,
            ),
        )(x, mult, shift)

    return out.reshape(N, C, H, W)


def reference(inputs, style, w_scale, b_scale, w_bias, b_bias):
    N, C, H, W = inputs.shape
    x = inputs.reshape(N, C, -1)
    mean = x.mean(axis=-1)[:, :, None, None]
    std = jnp.std(x, axis=-1, ddof=1)[:, :, None, None]
    scale = (style @ w_scale.T + b_scale[0])[:, :, None, None]
    bias = (style @ w_bias.T + b_bias[0])[:, :, None, None]
    return scale * (inputs - mean) / (std + EPS) + bias


if __name__ == "__main__":
    # Small shapes consistent with the module: batch=2, channels=4, 16x16
    # spatial, ada (style) size = 8.
    N, C, H, W, A = 2, 4, 16, 16, 8

    key = jax.random.PRNGKey(0)
    k1, k2, k3, k4, k5, k6 = jax.random.split(key, 6)

    inputs = jax.random.normal(k1, (N, C, H, W), dtype=jnp.float32)
    style = jax.random.normal(k2, (N, A), dtype=jnp.float32)

    # Deterministic Linear parameter init (nn.Linear-style uniform bound).
    bound = 1.0 / np.sqrt(A)
    w_scale = jax.random.uniform(k3, (C, A), jnp.float32, -bound, bound)
    b_scale = jax.random.uniform(k4, (1, C), jnp.float32, -bound, bound)
    w_bias = jax.random.uniform(k5, (C, A), jnp.float32, -bound, bound)
    b_bias = jax.random.uniform(k6, (1, C), jnp.float32, -bound, bound)

    ref = reference(inputs, style, w_scale, b_scale, w_bias, b_bias)

    # Fused single-kernel path.
    out = adaptive_instance_norm(inputs, style, w_scale, b_scale, w_bias, b_bias)
    out = jax.block_until_ready(out)
    assert out.shape == (N, C, H, W)
    np.testing.assert_allclose(np.asarray(out), np.asarray(ref),
                               rtol=1e-4, atol=1e-5)

    # Large-HW fallback path (force column tiling with a tiny tile budget so
    # the two-kernel stats+apply code is also exercised on-device).
    out2 = adaptive_instance_norm(inputs, style, w_scale, b_scale, w_bias,
                                  b_bias, max_tile_elems=8 * 128)
    out2 = jax.block_until_ready(out2)
    np.testing.assert_allclose(np.asarray(out2), np.asarray(ref),
                               rtol=1e-4, atol=1e-5)

    print("KERNEL_OK")
</pallas_src>

<mosaic_0001>
module attributes {stable_mosaic.version = 11 : i64} {
  func.func @_adain_fused_kernel(%arg0: i32, %arg1: memref<8x256xf32, #tpu.memory_space<vmem>>, %arg2: memref<8x2xf32, #tpu.memory_space<vmem>>, %arg3: memref<8x256xf32, #tpu.memory_space<vmem>>) attributes {dimension_semantics = [#tpu.dimension_semantics<parallel>], iteration_bounds = array<i64: 1>, scalar_prefetch = 0 : i64, scratch_operands = 0 : i64, tpu.core_type = #tpu.core_type<tc>, window_params = [{transform_indices = @transform_0, window_bounds = array<i64: 8, 256>}, {transform_indices = @transform_1, window_bounds = array<i64: 8, 2>}, {transform_indices = @transform_2, window_bounds = array<i64: 8, 256>}]} {
    %c0 = arith.constant 0 : index
    %c0_0 = arith.constant 0 : index
    %0 = vector.load %arg1[%c0, %c0_0] : memref<8x256xf32, #tpu.memory_space<vmem>>, vector<8x256xf32>
    %c0_1 = arith.constant 0 : index
    %c0_2 = arith.constant 0 : index
    %1 = vector.load %arg2[%c0_1, %c0_2] : memref<8x2xf32, #tpu.memory_space<vmem>>, vector<8x2xf32>
    %2 = vector.extract_strided_slice %1 {offsets = [0, 0], sizes = [8, 1], strides = [1, 1]} : vector<8x2xf32> to vector<8x1xf32>
    %3 = vector.extract_strided_slice %1 {offsets = [0, 1], sizes = [8, 1], strides = [1, 1]} : vector<8x2xf32> to vector<8x1xf32>
    %cst = arith.constant dense<0.000000e+00> : vector<8xf32>
    %4 = vector.multi_reduction <add>, %0, %cst [1] : vector<8x256xf32> to vector<8xf32>
    %5 = vector.shape_cast %4 : vector<8xf32> to vector<8x1xf32>
    %6 = arith.mulf %0, %0 : vector<8x256xf32>
    %cst_3 = arith.constant dense<0.000000e+00> : vector<8xf32>
    %7 = vector.multi_reduction <add>, %6, %cst_3 [1] : vector<8x256xf32> to vector<8xf32>
    %8 = vector.shape_cast %7 : vector<8xf32> to vector<8x1xf32>
    %cst_4 = arith.constant 3.906250e-03 : f32
    %9 = vector.broadcast %cst_4 : f32 to vector<8x1xf32>
    %10 = arith.mulf %5, %9 : vector<8x1xf32>
    %11 = arith.mulf %5, %10 : vector<8x1xf32>
    %12 = arith.subf %8, %11 : vector<8x1xf32>
    %cst_5 = arith.constant 0.000000e+00 : f32
    %13 = vector.broadcast %cst_5 : f32 to vector<8x1xf32>
    %14 = arith.maximumf %12, %13 : vector<8x1xf32>
    %cst_6 = arith.constant 2.550000e+02 : f32
    %15 = vector.broadcast %cst_6 : f32 to vector<8x1xf32>
    %16 = arith.divf %14, %15 : vector<8x1xf32>
    %17 = math.sqrt %16 : vector<8x1xf32>
    %cst_7 = arith.constant 9.99999997E-7 : f32
    %18 = vector.broadcast %cst_7 : f32 to vector<8x1xf32>
    %19 = arith.addf %17, %18 : vector<8x1xf32>
    %20 = tpu.reciprocal %19 : vector<8x1xf32> -> vector<8x1xf32>
    %21 = arith.mulf %2, %20 : vector<8x1xf32>
    %22 = arith.mulf %10, %21 : vector<8x1xf32>
    %23 = arith.subf %3, %22 : vector<8x1xf32>
    %24 = vector.broadcast %21 : vector<8x1xf32> to vector<8x256xf32>
    %25 = arith.mulf %0, %24 : vector<8x256xf32>
    %26 = vector.broadcast %23 : vector<8x1xf32> to vector<8x256xf32>
    %27 = arith.addf %25, %26 : vector<8x256xf32>
    %c0_8 = arith.constant 0 : index
    %c0_9 = arith.constant 0 : index
    %28 = vector.load %arg3[%c0_8, %c0_9] : memref<8x256xf32, #tpu.memory_space<vmem>>, vector<8x256xf32>
    tpu.vector_store %arg3[%c0_8, %c0_9], %27 {strides = array<i32>} : memref<8x256xf32, #tpu.memory_space<vmem>>, vector<8x256xf32>,
    return
  }
  func.func @transform_0(%arg0: i32) -> (i32, i32) {
    %c0_i32 = arith.constant 0 : i32
    %c0_i32_0 = arith.constant 0 : i32
    return %arg0, %c0_i32 : i32, i32
  }
  func.func @transform_1(%arg0: i32) -> (i32, i32) {
    %c0_i32 = arith.constant 0 : i32
    %c0_i32_0 = arith.constant 0 : i32
    return %arg0, %c0_i32 : i32, i32
  }
  func.func @transform_2(%arg0: i32) -> (i32, i32) {
    %c0_i32 = arith.constant 0 : i32
    %c0_i32_0 = arith.constant 0 : i32
    return %arg0, %c0_i32 : i32, i32
  }
}

</mosaic_0001>

<llo_original>
// kernel: tpu_custom_call.1
$region0: #{tpu_custom_call.1}
  #allocation0 [shape = 'u32[]', space=smem, size = 0x4, offset = 0x4, fixed_abs, tag = 'smem constant byte address 0x4 - core index']
  #allocation1 [shape = 'u32[144,128]{1,0:T(1,128)}', space=vmem, size = 0x12000, scoped, tag = 'internal scratch']
  %s0 = inlined_call_operand.hbm [shape: f32[8,256], index: 0, kind: input, shape index: {}]
  %s1 = inlined_call_operand.vmem [shape: f32[8,2], index: 1, kind: input, shape index: {}]
  %s2 = inlined_call_operand.hbm [shape: f32[8,256], index: 2, kind: output, shape index: {}]
  %s3 = sld [smem:[#allocation0]]
  $region22: #{tpu_custom_call.1} parent=0
    _
  %s5 = ssub.s32 1, %s3
  %s6 = scalar_select 0, %s5, %s3
  $region1: #{tpu_custom_call.1} parent=0
    #allocation2 [shape = 'u8[8192]{0}', space=vmem, size = 0x2000, scoped, tag = 'input window, operand 0, single buffered']
    #allocation3 [shape = 's32[1]{0}', space=sflag, size = 0x4, scoped, tag = 'scoped memory for tpu_custom_call.1']
    #allocation4 [shape = 's32[1]{0}', space=sflag, size = 0x4, scoped, tag = 'scoped memory for tpu_custom_call.1']
    #allocation5 [shape = 'u8[8192]{0}', space=vmem, size = 0x2000, scoped, tag = 'output window, operand 0, single buffered']
    %7 = vsyncpa [#allocation3], 0
    %8 = vsyncpa [#allocation4], 0
    // Predicated region
    $region2: #{tpu_custom_call.1} parent=1 // pred_check
      _
    $region3: #{tpu_custom_call.1} parent=1 // pred_check_branch
      %10 = sbr.rel (0) target = $region5
    $region4: #{tpu_custom_call.1} parent=1 // pred_region
      %s12 = ssub.s32 256, 256
      %13 = vsyncadd [#allocation3], %s12
      %s15 = sshll.u32 [#allocation2], 4
      %s16 = int_to_ptr.vmem [resolvable:$true] %s15
      %18 = dma.hbm_to_vmem [thread:$0]  %s0, 256, %s16, [#allocation3]
    $region5: #{tpu_custom_call.1} parent=1 // pred_fallthru
      _
    // Predicated region
    $region6: #{tpu_custom_call.1} parent=1 // pred_check
      _
    $region7: #{tpu_custom_call.1} parent=1 // pred_check_branch
      %20 = sbr.rel (0) target = $region9
    $region8: #{tpu_custom_call.1} parent=1 // pred_region
      _
    $region9: #{tpu_custom_call.1} parent=1 // pred_fallthru
      _
    // Predicated region
    $region10: #{tpu_custom_call.1} parent=1 // pred_check
      _
    $region11: #{tpu_custom_call.1} parent=1 // pred_check_branch
      %22 = sbr.rel (0) target = $region13
    $region12: #{tpu_custom_call.1} parent=1 // pred_region
      %23 = dma.done [#allocation3], 256
    $region13: #{tpu_custom_call.1} parent=1 // pred_fallthru
      _
    %v24 = vld [vmem:[#allocation2] sm:$0xff]
    %v25 = vld [vmem:[#allocation2 + $0x8] sm:$0xff]
    %v26 = vld [vmem:[%s1] sm:$0xff]
    %v27 = vadd.f32 %v24, %v25
    %28 = vadd.xlane.f32.xlu0 %v27
    %v29 = vpop.xlane.xlu0 %28
    %v30 = vmul.f32 %v24, %v24
    %v31 = vmul.f32 %v25, %v25
    %v32 = vadd.f32 %v30, %v31
    %33 = vadd.xlane.f32.xlu0 %v32
    %v34 = vpop.xlane.xlu0 %33
    %v35 = vmul.f32 %v29, 0.00390625
    %v36 = vmul.f32 %v29, %v35
    %v37 = vsub.f32 %v34, %v36
    %v38 = vmax.f32 %v37, 0.0
    %v39 = vrcp.pop 255.0
    %v40 = vmul.f32 %v38, %v39
    %v41 = vrsqrt.pop %v40
    %v42 = vmul.f32 %v40, %v41
    %vm43 = vcmp.eq.f32.partialorder %v40, inf
    %v44 = vsel %vm43, %v40, %v42
    %vm45 = vcmp.eq.f32.partialorder %v40, 0.0
    %v46 = vand.u32 %v40, 2147483648
    %v47 = vsel %vm45, %v46, %v44
    %v48 = vadd.f32 %v47, 1e-06
    %v49 = vrcp.pop %v48
    %v50 = vmul.f32 %v26, %v49
    %v51 = vmul.f32 %v35, %v50
    %53 = vrot.lane.b32.xlu0 %v51, 1
    %v54 = vpop.permute.xlu0 %53
    %v56 = vsub.f32 %v26, %v54
    %58 = vset.pattern.permute.xlu0 0
    %59 = vperm.xlu0 %58, %v50
    %v60 = vpop.permute.xlu0 %59
    %v62 = vmul.f32 %v24, %v60
    %v63 = vmul.f32 %v25, %v60
    %65 = vset.pattern.permute.xlu0 1
    %66 = vperm.xlu0 %65, %v56
    %v67 = vpop.permute.xlu0 %66
    %v69 = vadd.f32 %v62, %v67
    %v70 = vadd.f32 %v63, %v67
    %71 = vst [vmem:[#allocation5] sm:$0xff] %v69
    %72 = vst [vmem:[#allocation5 + $0x8] sm:$0xff] %v70
    // Predicated region
    $region14: #{tpu_custom_call.1} parent=1 // pred_check
      _
    $region15: #{tpu_custom_call.1} parent=1 // pred_check_branch
      %74 = sbr.rel (0) target = $region17
    $region16: #{tpu_custom_call.1} parent=1 // pred_region
      %s76 = ssub.s32 256, 256
      %77 = vsyncadd [#allocation4], %s76
      %s79 = sshll.u32 [#allocation5], 4
      %s80 = int_to_ptr.vmem [resolvable:$true] %s79
      %82 = dma.vmem_to_hbm [thread:$0]  %s80, 256, %s2, [#allocation4]
    $region17: #{tpu_custom_call.1} parent=1 // pred_fallthru
      _
    // Predicated region
    $region18: #{tpu_custom_call.1} parent=1 // pred_check
      _
    $region19: #{tpu_custom_call.1} parent=1 // pred_check_branch
      %84 = sbr.rel (0) target = $region21
    $region20: #{tpu_custom_call.1} parent=1 // pred_region
      %85 = dma.done [#allocation4], 256
    $region21: #{tpu_custom_call.1} parent=1 // pred_fallthru
      _
    %86 = vsyncpa [#allocation3], 1
    %87 = vsyncpa [#allocation4], 1

</llo_original>
